<compile_context>
chip_gen: v5e
topology: v5e:2x2
jax: 0.10.0
libtpu: 0.0.40
codegen_flags: <defaults>
</compile_context>

<pallas_src>
import jax
import jax.numpy as jnp
from jax.experimental import pallas as pl
from jax.experimental.pallas import tpu as pltpu

_SUBLANES = 8    # vreg sublane count
_LANES = 128     # vreg lane count


def _alpha_chooser_kernel(pre_alpha_ref, out_ref):
    # Elementwise: sigmoid (EUP) + add + max (VPU), one full vreg tile.
    x = pre_alpha_ref[...]
    alpha = 1.0 + jax.nn.sigmoid(x)
    # Lower clamp kept for parity with the reference (no-op in f32, same as
    # torch.clamp(min=1+1e-8) in f32).  Upper clamp omitted: alpha <= 2 always.
    out_ref[...] = jnp.maximum(alpha, jnp.float32(1.0 + 1e-8))


def alpha_chooser(pre_alpha: jax.Array) -> jax.Array:
    """Pallas implementation of AlphaChooser.forward().

    pre_alpha: (head_count,) float32
    returns:   (head_count,) float32 in [1+1e-8, 2]
    """
    head_count = pre_alpha.shape[0]
    padded = _SUBLANES * _LANES  # one full (8, 128) vreg tile

    # Layout plumbing only: present a lane/sublane-dense tile to the kernel.
    x_tile = (
        jnp.zeros((padded,), dtype=jnp.float32)
        .at[:head_count]
        .set(pre_alpha)
        .reshape(_SUBLANES, _LANES)
    )

    out_tile = pl.pallas_call(
        _alpha_chooser_kernel,
        out_shape=jax.ShapeDtypeStruct((_SUBLANES, _LANES), jnp.float32),
        # Whole-array VMEM residency; no grid, no pipelining machinery.
        in_specs=[pl.BlockSpec(memory_space=pltpu.MemorySpace.VMEM)],
        out_specs=pl.BlockSpec(memory_space=pltpu.MemorySpace.VMEM),
    )(x_tile)

    return out_tile.reshape(padded)[:head_count]


if __name__ == "__main__":
    head_count = 8

    # Deterministic "parameter" init, mirroring torch.randn(head_count).
    key = jax.random.PRNGKey(0)
    pre_alpha = jax.random.normal(key, (head_count,), dtype=jnp.float32)

    alpha = alpha_chooser(pre_alpha)
    jax.block_until_ready(alpha)

    # Pure-JAX reference (same semantics as the PyTorch forward).
    ref = jnp.clip(1.0 + jax.nn.sigmoid(pre_alpha), 1.0 + 1e-8, 2.0)
    assert alpha.shape == (head_count,)
    assert bool(jnp.all(alpha >= 1.0)) and bool(jnp.all(alpha <= 2.0))
    assert jnp.allclose(alpha, ref, atol=1e-6), (alpha, ref)

    print("KERNEL_OK")
</pallas_src>

<mosaic_0001>
module attributes {stable_mosaic.version = 11 : i64} {
  func.func @_alpha_chooser_kernel(%arg0: memref<8x128xf32, #tpu.memory_space<vmem>>, %arg1: memref<8x128xf32, #tpu.memory_space<vmem>>) attributes {dimension_semantics = [], scalar_prefetch = 0 : i64, scratch_operands = 0 : i64, tpu.core_type = #tpu.core_type<tc>} {
    %c0 = arith.constant 0 : index
    %c0_0 = arith.constant 0 : index
    %0 = vector.load %arg0[%c0, %c0_0] : memref<8x128xf32, #tpu.memory_space<vmem>>, vector<8x128xf32>
    %1 = arith.negf %0 : vector<8x128xf32>
    %2 = math.exp %1 : vector<8x128xf32>
    %cst = arith.constant 1.000000e+00 : f32
    %3 = vector.broadcast %cst : f32 to vector<8x128xf32>
    %4 = arith.addf %3, %2 : vector<8x128xf32>
    %5 = arith.divf %3, %4 : vector<8x128xf32>
    %cst_1 = arith.constant 1.000000e+00 : f32
    %6 = vector.broadcast %cst_1 : f32 to vector<8x128xf32>
    %7 = arith.addf %6, %5 : vector<8x128xf32>
    %cst_2 = arith.constant 1.000000e+00 : f32
    %8 = vector.broadcast %cst_2 : f32 to vector<8x128xf32>
    %9 = arith.maximumf %7, %8 : vector<8x128xf32>
    %c0_3 = arith.constant 0 : index
    %c0_4 = arith.constant 0 : index
    %10 = vector.load %arg1[%c0_3, %c0_4] : memref<8x128xf32, #tpu.memory_space<vmem>>, vector<8x128xf32>
    tpu.vector_store %arg1[%c0_3, %c0_4], %9 {strides = array<i32>} : memref<8x128xf32, #tpu.memory_space<vmem>>, vector<8x128xf32>,
    return
  }
}

</mosaic_0001>

<llo_original>
// kernel: tpu_custom_call.1
$region0: #{tpu_custom_call.1}
  #allocation0 [shape = 'u32[]', space=smem, size = 0x4, offset = 0x4, fixed_abs, tag = 'smem constant byte address 0x4 - core index']
  #allocation1 [shape = 'u32[72,128]{1,0:T(1,128)}', space=vmem, size = 0x9000, scoped, tag = 'internal scratch']
  %s0 = inlined_call_operand.hbm [shape: f32[8,128], index: 0, kind: input, shape index: {}]
  %s1 = inlined_call_operand.hbm [shape: f32[8,128], index: 1, kind: output, shape index: {}]
  %s2 = sld [smem:[#allocation0]]
  $region18: #{tpu_custom_call.1} parent=0
    _
  %s4 = ssub.s32 1, %s2
  %s5 = scalar_select 0, %s4, %s2
  $region1: #{tpu_custom_call.1} parent=0
    #allocation2 [shape = 'u8[4096]{0}', space=vmem, size = 0x1000, scoped, tag = 'input window, operand 0, single buffered']
    #allocation3 [shape = 's32[1]{0}', space=sflag, size = 0x4, scoped, tag = 'scoped memory for tpu_custom_call.1']
    #allocation4 [shape = 's32[1]{0}', space=sflag, size = 0x4, scoped, tag = 'scoped memory for tpu_custom_call.1']
    #allocation5 [shape = 'u8[4096]{0}', space=vmem, size = 0x1000, scoped, tag = 'output window, operand 0, single buffered']
    %6 = vsyncpa [#allocation3], 0
    %7 = vsyncpa [#allocation4], 0
    // Predicated region
    $region2: #{tpu_custom_call.1} parent=1 // pred_check
      _
    $region3: #{tpu_custom_call.1} parent=1 // pred_check_branch
      %9 = sbr.rel (0) target = $region5
    $region4: #{tpu_custom_call.1} parent=1 // pred_region
      %11 = vsyncadd [#allocation3], 0
      %s13 = sshll.u32 %s0, 4
      %s14 = int_to_ptr.hbm [resolvable:$true] %s13
      %s15 = sshll.u32 [#allocation2], 4
      %s16 = int_to_ptr.vmem [resolvable:$true] %s15
      %18 = dma.hbm_to_vmem [thread:$0]  %s14, 128, %s16, [#allocation3]
    $region5: #{tpu_custom_call.1} parent=1 // pred_fallthru
      _
    // Predicated region
    $region6: #{tpu_custom_call.1} parent=1 // pred_check
      _
    $region7: #{tpu_custom_call.1} parent=1 // pred_check_branch
      %20 = sbr.rel (0) target = $region9
    $region8: #{tpu_custom_call.1} parent=1 // pred_region
      %22 = dma.done [#allocation3], 128
    $region9: #{tpu_custom_call.1} parent=1 // pred_fallthru
      _
    %v23 = vld [vmem:[#allocation2] sm:$0xff]
    %v24 = vxor.u32 %v23, 2147483648
    %v25 = vmul.f32 %v24, 1.442695
    %v26 = vpow.pop %v25
    %v27 = vadd.f32 %v26, 1.0
    %v28 = vrcp.pop %v27
    %v29 = vmul.f32 %v27, %v28
    %v30 = vsub.f32 1.0, %v29
    %v31 = vmul.f32 %v28, %v30
    %v32 = vadd.f32 %v28, %v31
    %vm33 = vweird.f32 %v27
    %vm34 = vweird.f32 %v28
    %vm35 = vmor %vm33, %vm34
    %v36 = vsel %vm35, %v28, %v32
    %v37 = vand.u32 2147483647, %v27
    %vm38 = vcmp.eq.f32.partialorder %v37, 8.507059e+37
    %v39 = vand.u32 %v27, 2147483648
    %v40 = vor.u32 1.1754944e-38, %v39
    %v41 = vsel %vm38, %v40, %v36
    %v42 = vmul.f32 1.0, %v41
    %v43 = vadd.f32 %v42, 1.0
    %v44 = vmax.f32 %v43, 1.0
    %45 = vst [vmem:[#allocation5] sm:$0xff] %v44
    // Predicated region
    $region10: #{tpu_custom_call.1} parent=1 // pred_check
      _
    $region11: #{tpu_custom_call.1} parent=1 // pred_check_branch
      %47 = sbr.rel (0) target = $region13
    $region12: #{tpu_custom_call.1} parent=1 // pred_region
      %49 = vsyncadd [#allocation4], 0
      %s51 = sshll.u32 [#allocation5], 4
      %s52 = int_to_ptr.vmem [resolvable:$true] %s51
      %s53 = sshll.u32 %s1, 4
      %s54 = int_to_ptr.hbm [resolvable:$true] %s53
      %56 = dma.vmem_to_hbm [thread:$0]  %s52, 128, %s54, [#allocation4]
    $region13: #{tpu_custom_call.1} parent=1 // pred_fallthru
      _
    // Predicated region
    $region14: #{tpu_custom_call.1} parent=1 // pred_check
      _
    $region15: #{tpu_custom_call.1} parent=1 // pred_check_branch
      %58 = sbr.rel (0) target = $region17
    $region16: #{tpu_custom_call.1} parent=1 // pred_region
      %60 = dma.done [#allocation4], 128
    $region17: #{tpu_custom_call.1} parent=1 // pred_fallthru
      _
    %61 = vsyncpa [#allocation3], 1
    %62 = vsyncpa [#allocation4], 1

</llo_original>
